<compile_context>
chip_gen: v5e
topology: v5e:2x2
jax: 0.10.0
libtpu: 0.0.40
codegen_flags: <defaults>
</compile_context>

<pallas_src>
from functools import partial

import jax
import jax.numpy as jnp
from jax.experimental import pallas as pl
from jax.experimental.pallas import tpu as pltpu


def _round_up(x, m):
    return (x + m - 1) // m * m


def _critic_kernel(s_ref, a_ref, w_ref, v_ref, out_ref, *, sd_pad, ad_pad):
    """One batch tile: h1 = relu(s@Ws + a@Wa + b1); h2 = relu(h1@W2 + b2);
    v = sum(h2 * w3_row) + b3."""
    sd = s_ref.shape[1]            # true state_dim
    ad = a_ref.shape[1]            # true num_actions
    colw = w_ref.shape[1]          # lane width (128-padded hidden size)
    w2_off = sd_pad + ad_pad

    # Static slices into the packed, VMEM-resident weight buffer.
    w_s = w_ref[0:sd, :]                       # (sd,  colw) bf16
    w_a = w_ref[sd_pad:sd_pad + ad, :]         # (ad,  colw) bf16
    w_2 = w_ref[w2_off:w2_off + colw, :]       # (colw, colw) bf16 (zero-padded)

    # Packed f32 row vectors (biases / fc3 row), loaded once per tile.
    b1 = v_ref[0:1, :]                         # fused state+action bias
    b2 = v_ref[1:2, :]                         # fc2 bias (zero-padded)
    w3 = v_ref[2:3, :]                         # fc3 weight row (zero-padded)
    b3 = v_ref[3:4, 0:1]                       # fc3 bias as (1, 1)

    # Cast activations to bf16 in-kernel (no wrapper-side cast / concat / pad).
    s = s_ref[...].astype(jnp.bfloat16)
    a = a_ref[...].astype(jnp.bfloat16)

    # Layer 1: two MXU dots (f32 accumulate) + bias + ReLU on the VPU.
    h1 = (jnp.dot(s, w_s, preferred_element_type=jnp.float32)
          + jnp.dot(a, w_a, preferred_element_type=jnp.float32)
          + b1)
    h1 = jnp.maximum(h1, 0.0)

    # Layer 2: fc2 matmul (bf16 operands, f32 accumulate) + bias + ReLU.
    h2 = jnp.maximum(
        jnp.dot(h1.astype(jnp.bfloat16), w_2,
                preferred_element_type=jnp.float32) + b2, 0.0)

    # Layer 3: value head.  VPU multiply + cross-lane (XLU) reduction instead
    # of an N=1 MXU matmul; padded columns contribute 0 (w3 pads are zero).
    v = jnp.sum(h2 * w3, axis=-1, keepdims=True) + b3
    out_ref[...] = v.astype(out_ref.dtype)


def pack_critic_params(params, state_dim, num_actions, fc1, fc2):
    """Pack 8 small parameter tensors into 2 contiguous buffers.

    Returns:
      wpack: (sd_pad + ad_pad + colw, colw) bf16 — [Ws ; Wa ; W2], 16-row aligned
      vpack: (4, colw) f32 — rows: b1 (= bs+ba), b2, w3_row, b3 (broadcast)
    """
    ws, bs, wa, ba, w2, b2, w3, b3 = params
    sd_pad = _round_up(state_dim, 16)        # bf16 sublane tile alignment
    ad_pad = _round_up(num_actions, 16)
    colw = _round_up(max(fc1, fc2), 128)     # full lane width (no masked lanes)

    wsp = jnp.zeros((sd_pad, colw), jnp.float32).at[:state_dim, :fc1].set(ws)
    wap = jnp.zeros((ad_pad, colw), jnp.float32).at[:num_actions, :fc1].set(wa)
    w2p = jnp.zeros((colw, colw), jnp.float32).at[:fc1, :fc2].set(w2)
    wpack = jnp.concatenate([wsp, wap, w2p], axis=0).astype(jnp.bfloat16)

    def _row(v):
        v = jnp.asarray(v, jnp.float32).reshape(1, -1)
        return jnp.pad(v, ((0, 0), (0, colw - v.shape[1])))

    b1_row = _row(bs + ba)                                 # fused bias
    b2_row = _row(b2)
    w3_row = _row(jnp.reshape(w3, (1, -1)))
    b3_row = jnp.broadcast_to(
        jnp.reshape(b3, (1, 1)).astype(jnp.float32), (1, colw))
    vpack = jnp.concatenate([b1_row, b2_row, w3_row, b3_row], axis=0)
    return wpack, vpack, sd_pad, ad_pad


@partial(jax.jit, static_argnames=("sd_pad", "ad_pad", "tile_b"))
def critic_forward(states, actions, wpack, vpack, sd_pad, ad_pad, tile_b=4096):
    """states: (B, state_dim) f32, actions: (B, num_actions) f32 -> (B, 1) f32."""
    B, sd = states.shape
    ad = actions.shape[1]
    colw = wpack.shape[1]

    # ---- batch tiling ------------------------------------------------------
    tile_b = max(16, _round_up(tile_b, 16))
    b_round = _round_up(B, 16)               # bf16 sublane-pack friendly
    tb = min(tile_b, b_round)
    # v7x megacore: if a single tile would cover a large batch, split it so the
    # parallel grid axis has >= 2 steps for the two TensorCores to share.
    if tb == b_round and b_round >= 1024:
        tb = _round_up((b_round + 1) // 2, 256)
    b_pad = _round_up(B, tb)
    nb = b_pad // tb

    # Pad the batch dim only when needed (common large-batch case is copy-free;
    # there is no feature-dim concat / pad / cast on the activation path).
    if b_pad != B:
        states = jnp.pad(states, ((0, b_pad - B), (0, 0)))
        actions = jnp.pad(actions, ((0, b_pad - B), (0, 0)))

    out = pl.pallas_call(
        partial(_critic_kernel, sd_pad=sd_pad, ad_pad=ad_pad),
        out_shape=jax.ShapeDtypeStruct((b_pad, 1), jnp.float32),
        grid=(nb,),
        in_specs=[
            pl.BlockSpec((tb, sd), lambda i: (i, 0)),                 # states
            pl.BlockSpec((tb, ad), lambda i: (i, 0)),                 # actions
            pl.BlockSpec(wpack.shape, lambda i: (0, 0)),              # weights (resident)
            pl.BlockSpec(vpack.shape, lambda i: (0, 0)),              # biases / w3 row
        ],
        out_specs=pl.BlockSpec((tb, 1), lambda i: (i, 0)),
        compiler_params=pltpu.CompilerParams(
            dimension_semantics=("parallel",),
            # ~20 MiB worst case at tile_b=8192; safe on v5e/v6e (128 MiB phys)
            # and v7x (64 MiB phys, 32 MiB default scoped).
            vmem_limit_bytes=32 * 1024 * 1024,
        ),
    )(states, actions, wpack, vpack)
    return out[:B]


def init_linear(key, in_features, out_features):
    """Deterministic init mimicking torch.nn.Linear defaults.

    Returns W already transposed to (in, out) and bias as (1, out)."""
    kw, kb = jax.random.split(key)
    bound = 1.0 / jnp.sqrt(jnp.float32(in_features))
    w = jax.random.uniform(kw, (in_features, out_features),
                           minval=-bound, maxval=bound, dtype=jnp.float32)
    b = jax.random.uniform(kb, (1, out_features),
                           minval=-bound, maxval=bound, dtype=jnp.float32)
    return w, b


def reference_forward_f32(states, actions, params):
    ws, bs, wa, ba, w2, b2, w3, b3 = params
    h1 = jax.nn.relu(states @ ws + bs + actions @ wa + ba)
    h2 = jax.nn.relu(h1 @ w2 + b2)
    return h2 @ w3 + b3


def reference_forward_bf16(states, actions, params):
    """Mirrors the kernel's bf16-in / f32-accumulate pipeline in plain JAX."""
    ws, bs, wa, ba, w2, b2, w3, b3 = params
    s = states.astype(jnp.bfloat16)
    a = actions.astype(jnp.bfloat16)
    h1 = jax.nn.relu(
        jnp.dot(s, ws.astype(jnp.bfloat16), preferred_element_type=jnp.float32)
        + jnp.dot(a, wa.astype(jnp.bfloat16), preferred_element_type=jnp.float32)
        + (bs + ba))
    h2 = jax.nn.relu(
        jnp.dot(h1.astype(jnp.bfloat16), w2.astype(jnp.bfloat16),
                preferred_element_type=jnp.float32) + b2)
    return jnp.sum(h2 * w3.T, axis=-1, keepdims=True) + b3


if __name__ == "__main__":
    # Shapes consistent with the module's forward:
    #   state_shape = (16,), num_actions = 4, layers = [64, 32], batch = 8
    B, STATE_DIM, NUM_ACTIONS = 8, 16, 4
    FC1, FC2 = 64, 32

    root = jax.random.PRNGKey(0)
    k_s, k_a, k1, k2, k3, k4 = jax.random.split(root, 6)

    states = jax.random.normal(k_s, (B, STATE_DIM), dtype=jnp.float32)
    actions = jax.random.normal(k_a, (B, NUM_ACTIONS), dtype=jnp.float32)

    ws, bs = init_linear(k1, STATE_DIM, FC1)     # state_encoder
    wa, ba = init_linear(k2, NUM_ACTIONS, FC1)   # action_encoder
    w2, b2 = init_linear(k3, FC1, FC2)           # fc2
    w3, b3 = init_linear(k4, FC2, 1)             # fc3
    params = (ws, bs, wa, ba, w2, b2, w3, b3)

    # One-time packing of all parameters into 2 buffers (4 input DMAs per call).
    wpack, vpack, sd_pad, ad_pad = pack_critic_params(
        params, STATE_DIM, NUM_ACTIONS, FC1, FC2)

    # --- small-batch (inference-style) check --------------------------------
    values = critic_forward(states, actions, wpack, vpack, sd_pad, ad_pad)
    values = jax.block_until_ready(values)

    ref_bf16 = reference_forward_bf16(states, actions, params)
    ref_f32 = reference_forward_f32(states, actions, params)

    assert values.shape == (B, 1)
    assert jnp.allclose(values, ref_bf16, atol=5e-3, rtol=5e-3), (
        "kernel does not match bf16-path reference")
    assert jnp.allclose(values, ref_f32, atol=5e-2, rtol=5e-2), (
        "kernel drifted too far from f32 reference")

    # --- larger batch: exercises batch padding, multi-tile grid and the
    # v7x two-TensorCore tile split ------------------------------------------
    B2 = 1040
    k_s2, k_a2 = jax.random.split(jax.random.PRNGKey(1))
    states2 = jax.random.normal(k_s2, (B2, STATE_DIM), dtype=jnp.float32)
    actions2 = jax.random.normal(k_a2, (B2, NUM_ACTIONS), dtype=jnp.float32)
    values2 = jax.block_until_ready(
        critic_forward(states2, actions2, wpack, vpack, sd_pad, ad_pad))
    ref2 = reference_forward_bf16(states2, actions2, params)
    assert values2.shape == (B2, 1)
    assert jnp.allclose(values2, ref2, atol=5e-3, rtol=5e-3), (
        "multi-tile path does not match bf16 reference")

    print("KERNEL_OK")
</pallas_src>

<mosaic_0001>
module attributes {stable_mosaic.version = 11 : i64} {
  func.func @_critic_kernel(%arg0: i32, %arg1: memref<16x16xf32, #tpu.memory_space<vmem>>, %arg2: memref<16x4xf32, #tpu.memory_space<vmem>>, %arg3: memref<160x128xbf16, #tpu.memory_space<vmem>>, %arg4: memref<4x128xf32, #tpu.memory_space<vmem>>, %arg5: memref<16x1xf32, #tpu.memory_space<vmem>>) attributes {dimension_semantics = [#tpu.dimension_semantics<parallel>], iteration_bounds = array<i64: 1>, scalar_prefetch = 0 : i64, scratch_operands = 0 : i64, tpu.core_type = #tpu.core_type<tc>, window_params = [{transform_indices = @transform_0, window_bounds = array<i64: 16, 16>}, {transform_indices = @transform_1, window_bounds = array<i64: 16, 4>}, {pipeline_mode = #tpu.pipeline_mode<synchronous>, transform_indices = @transform_2, window_bounds = array<i64: 160, 128>}, {pipeline_mode = #tpu.pipeline_mode<synchronous>, transform_indices = @transform_3, window_bounds = array<i64: 4, 128>}, {transform_indices = @transform_4, window_bounds = array<i64: 16, 1>}]} {
    %c0 = arith.constant 0 : index
    %c0_0 = arith.constant 0 : index
    %0 = vector.load %arg3[%c0, %c0_0] : memref<160x128xbf16, #tpu.memory_space<vmem>>, vector<16x128xbf16>
    %c16 = arith.constant 16 : index
    %c0_1 = arith.constant 0 : index
    %1 = vector.load %arg3[%c16, %c0_1] : memref<160x128xbf16, #tpu.memory_space<vmem>>, vector<4x128xbf16>
    %c32 = arith.constant 32 : index
    %c0_2 = arith.constant 0 : index
    %2 = vector.load %arg3[%c32, %c0_2] : memref<160x128xbf16, #tpu.memory_space<vmem>>, vector<128x128xbf16>
    %c0_3 = arith.constant 0 : index
    %c0_4 = arith.constant 0 : index
    %3 = vector.load %arg4[%c0_3, %c0_4] : memref<4x128xf32, #tpu.memory_space<vmem>>, vector<1x128xf32>
    %c1 = arith.constant 1 : index
    %c0_5 = arith.constant 0 : index
    %4 = vector.load %arg4[%c1, %c0_5] : memref<4x128xf32, #tpu.memory_space<vmem>>, vector<1x128xf32>
    %c2 = arith.constant 2 : index
    %c0_6 = arith.constant 0 : index
    %5 = vector.load %arg4[%c2, %c0_6] : memref<4x128xf32, #tpu.memory_space<vmem>>, vector<1x128xf32>
    %c3 = arith.constant 3 : index
    %c0_7 = arith.constant 0 : index
    %6 = vector.load %arg4[%c3, %c0_7] : memref<4x128xf32, #tpu.memory_space<vmem>>, vector<1x1xf32>
    %c0_8 = arith.constant 0 : index
    %c0_9 = arith.constant 0 : index
    %7 = vector.load %arg1[%c0_8, %c0_9] : memref<16x16xf32, #tpu.memory_space<vmem>>, vector<16x16xf32>
    %8 = arith.truncf %7 : vector<16x16xf32> to vector<16x16xbf16>
    %c0_10 = arith.constant 0 : index
    %c0_11 = arith.constant 0 : index
    %9 = vector.load %arg2[%c0_10, %c0_11] : memref<16x4xf32, #tpu.memory_space<vmem>>, vector<16x4xf32>
    %10 = arith.truncf %9 : vector<16x4xf32> to vector<16x4xbf16>
    %cst = arith.constant dense<0.000000e+00> : vector<16x128xf32>
    %11 = tpu.matmul %8, %0, %cst {dimension_numbers = #tpu.dot_dimension_numbers<[1], [0], [0], [1], [0, 0, 1, 1], [], []>} : vector<16x16xbf16>, vector<16x128xbf16>, vector<16x128xf32> -> vector<16x128xf32>
    %cst_12 = arith.constant dense<0.000000e+00> : vector<16x128xf32>
    %12 = tpu.matmul %10, %1, %cst_12 {dimension_numbers = #tpu.dot_dimension_numbers<[1], [0], [0], [1], [0, 0, 1, 1], [], []>} : vector<16x4xbf16>, vector<4x128xbf16>, vector<16x128xf32> -> vector<16x128xf32>
    %13 = arith.addf %11, %12 : vector<16x128xf32>
    %14 = vector.broadcast %3 : vector<1x128xf32> to vector<16x128xf32>
    %15 = arith.addf %13, %14 : vector<16x128xf32>
    %cst_13 = arith.constant 0.000000e+00 : f32
    %16 = vector.broadcast %cst_13 : f32 to vector<16x128xf32>
    %17 = arith.maximumf %15, %16 : vector<16x128xf32>
    %18 = arith.truncf %17 : vector<16x128xf32> to vector<16x128xbf16>
    %cst_14 = arith.constant dense<0.000000e+00> : vector<16x128xf32>
    %19 = tpu.matmul %18, %2, %cst_14 {dimension_numbers = #tpu.dot_dimension_numbers<[1], [0], [0], [1], [0, 0, 1, 1], [], []>} : vector<16x128xbf16>, vector<128x128xbf16>, vector<16x128xf32> -> vector<16x128xf32>
    %20 = vector.broadcast %4 : vector<1x128xf32> to vector<16x128xf32>
    %21 = arith.addf %19, %20 : vector<16x128xf32>
    %cst_15 = arith.constant 0.000000e+00 : f32
    %22 = vector.broadcast %cst_15 : f32 to vector<16x128xf32>
    %23 = arith.maximumf %21, %22 : vector<16x128xf32>
    %24 = vector.broadcast %5 : vector<1x128xf32> to vector<16x128xf32>
    %25 = arith.mulf %23, %24 : vector<16x128xf32>
    %cst_16 = arith.constant dense<0.000000e+00> : vector<16xf32>
    %26 = vector.multi_reduction <add>, %25, %cst_16 [1] : vector<16x128xf32> to vector<16xf32>
    %27 = vector.shape_cast %26 : vector<16xf32> to vector<16x1xf32>
    %28 = vector.broadcast %6 : vector<1x1xf32> to vector<16x1xf32>
    %29 = arith.addf %27, %28 : vector<16x1xf32>
    %c0_17 = arith.constant 0 : index
    %c0_18 = arith.constant 0 : index
    %30 = vector.load %arg5[%c0_17, %c0_18] : memref<16x1xf32, #tpu.memory_space<vmem>>, vector<16x1xf32>
    tpu.vector_store %arg5[%c0_17, %c0_18], %29 {strides = array<i32>} : memref<16x1xf32, #tpu.memory_space<vmem>>, vector<16x1xf32>,
    return
  }
  func.func @transform_0(%arg0: i32) -> (i32, i32) {
    %c0_i32 = arith.constant 0 : i32
    %c0_i32_0 = arith.constant 0 : i32
    return %arg0, %c0_i32 : i32, i32
  }
  func.func @transform_1(%arg0: i32) -> (i32, i32) {
    %c0_i32 = arith.constant 0 : i32
    %c0_i32_0 = arith.constant 0 : i32
    return %arg0, %c0_i32 : i32, i32
  }
  func.func @transform_2(%arg0: i32) -> (i32, i32) {
    %c0_i32 = arith.constant 0 : i32
    %c0_i32_0 = arith.constant 0 : i32
    %c0_i32_1 = arith.constant 0 : i32
    return %c0_i32, %c0_i32_0 : i32, i32
  }
  func.func @transform_3(%arg0: i32) -> (i32, i32) {
    %c0_i32 = arith.constant 0 : i32
    %c0_i32_0 = arith.constant 0 : i32
    %c0_i32_1 = arith.constant 0 : i32
    return %c0_i32, %c0_i32_0 : i32, i32
  }
  func.func @transform_4(%arg0: i32) -> (i32, i32) {
    %c0_i32 = arith.constant 0 : i32
    %c0_i32_0 = arith.constant 0 : i32
    return %arg0, %c0_i32 : i32, i32
  }
}

</mosaic_0001>

<llo_original>
// kernel: critic_forward.1
$region0: #{critic_forward.1}
  #allocation0 [shape = 'u32[]', space=smem, size = 0x4, offset = 0x4, fixed_abs, tag = 'smem constant byte address 0x4 - core index']
  #allocation1 [shape = 'u32[72,128]{1,0:T(1,128)}', space=vmem, size = 0x9000, scoped, tag = 'internal scratch']
  %s0 = inlined_call_operand.vmem [shape: f32[16,16], index: 0, kind: input, shape index: {}]
  %s1 = inlined_call_operand.vmem [shape: f32[16,4], index: 1, kind: input, shape index: {}]
  %s2 = inlined_call_operand.hbm [shape: bf16[160,128], index: 2, kind: input, shape index: {}]
  %s3 = inlined_call_operand.vmem [shape: f32[4,128], index: 3, kind: input, shape index: {}]
  %s4 = inlined_call_operand.vmem [shape: f32[16,1], index: 4, kind: output, shape index: {}]
  %s5 = sld [smem:[#allocation0]]
  $region30: #{critic_forward.1} parent=0
    _
  %s7 = ssub.s32 1, %s5
  %s8 = scalar_select 0, %s7, %s5
  $region1: #{critic_forward.1} parent=0
    #allocation2 [shape = 'u8[40960]{0}', space=vmem, size = 0xa000, scoped, tag = 'input window, operand 2, single buffered']
    #allocation3 [shape = 's32[1]{0}', space=sflag, size = 0x4, scoped, tag = 'scoped memory for critic_forward.1']
    %9 = vsyncpa [#allocation3], 0
    // Predicated region
    $region2: #{critic_forward.1} parent=1 // pred_check
      _
    $region3: #{critic_forward.1} parent=1 // pred_check_branch
      %11 = sbr.rel (0) target = $region5
    $region4: #{critic_forward.1} parent=1 // pred_region
      _
    $region5: #{critic_forward.1} parent=1 // pred_fallthru
      _
    // Predicated region
    $region6: #{critic_forward.1} parent=1 // pred_check
      _
    $region7: #{critic_forward.1} parent=1 // pred_check_branch
      %13 = sbr.rel (0) target = $region9
    $region8: #{critic_forward.1} parent=1 // pred_region
      _
    $region9: #{critic_forward.1} parent=1 // pred_fallthru
      _
    // Predicated region
    $region10: #{critic_forward.1} parent=1 // pred_check
      _
    $region11: #{critic_forward.1} parent=1 // pred_check_branch
      %15 = sbr.rel (0) target = $region13
    $region12: #{critic_forward.1} parent=1 // pred_region
      %17 = vsyncadd [#allocation3], 0
      %s18 = sshll.u32 %s2, 4
      %s19 = int_to_ptr.hbm [resolvable:$true] %s18
      %s20 = sshll.u32 [#allocation2], 4
      %s21 = int_to_ptr.vmem [resolvable:$true] %s20
      %26 = dma.hbm_to_vmem [thread:$0]  %s19, 1280, %s21, [#allocation3], 64, 64, 4
    $region13: #{critic_forward.1} parent=1 // pred_fallthru
      _
    // Predicated region
    $region14: #{critic_forward.1} parent=1 // pred_check
      _
    $region15: #{critic_forward.1} parent=1 // pred_check_branch
      %28 = sbr.rel (0) target = $region17
    $region16: #{critic_forward.1} parent=1 // pred_region
      _
    $region17: #{critic_forward.1} parent=1 // pred_fallthru
      _
    // Predicated region
    $region18: #{critic_forward.1} parent=1 // pred_check
      _
    $region19: #{critic_forward.1} parent=1 // pred_check_branch
      %30 = sbr.rel (0) target = $region21
    $region20: #{critic_forward.1} parent=1 // pred_region
      %32 = dma.done [#allocation3], 1280
    $region21: #{critic_forward.1} parent=1 // pred_fallthru
      _
    %v34 = vld [vmem:[#allocation2] sm:$0xf]
    %v35 = vld [vmem:[#allocation2 + $0x4] sm:$0xf]
    %v36 = vld [vmem:[#allocation2 + $0x8] sm:$0x3]
    %v37 = vld [vmem:[#allocation2 + $0x10] sm:$0xf]
    %v38 = vld [vmem:[#allocation2 + $0x14] sm:$0xf]
    %v39 = vld [vmem:[#allocation2 + $0x18] sm:$0xf]
    %v40 = vld [vmem:[#allocation2 + $0x1c] sm:$0xf]
    %v41 = vld [vmem:[#allocation2 + $0x20] sm:$0xf]
    %v42 = vld [vmem:[#allocation2 + $0x24] sm:$0xf]
    %v43 = vld [vmem:[#allocation2 + $0x28] sm:$0xf]
    %v44 = vld [vmem:[#allocation2 + $0x2c] sm:$0xf]
    %v45 = vld [vmem:[#allocation2 + $0x30] sm:$0xf]
    %v46 = vld [vmem:[#allocation2 + $0x34] sm:$0xf]
    %v47 = vld [vmem:[#allocation2 + $0x38] sm:$0xf]
    %v48 = vld [vmem:[#allocation2 + $0x3c] sm:$0xf]
    %v49 = vld [vmem:[#allocation2 + $0x40] sm:$0xf]
    %v50 = vld [vmem:[#allocation2 + $0x44] sm:$0xf]
    %v51 = vld [vmem:[#allocation2 + $0x48] sm:$0xf]
    %v52 = vld [vmem:[#allocation2 + $0x4c] sm:$0xf]
    %v53 = vld [vmem:[%s3] sm:$0x1]
    %v54 = vld [vmem:[%s3 + $0x1] sm:$0x1]
    %v55 = vld [vmem:[%s3 + $0x2] sm:$0x1]
    %v56 = vld [vmem:[%s3 + $0x3] sm:$0x1]
    %v57 = vld [vmem:[%s0] sm:$0xff]
    %v58 = vld [vmem:[%s0 + $0x8] sm:$0xff]
    %v59 = vpack.c.bf16 %v58, %v57
    %v60 = vld [vmem:[%s1] sm:$0xff]
    %v61 = vld [vmem:[%s1 + $0x8] sm:$0xff]
    %v62 = vpack.c.bf16 %v61, %v60
    %vm63 = vcmask 31744
    %v65 = vsel %vm63, %v62, 0
    %vm67 = vcmask 1041408
    %v69 = vsel %vm67, %v36, 0
    %71 = vmatpush.bf16.msra.mxu0 0
    %72 = vmatpush.bf16.msra.mxu0 0
    %73 = vmatpush.bf16.msra.mxu0 0
    %74 = vmatpush.bf16.msra.mxu0 0
    %75 = vmatpush.bf16.msra.mxu0 0
    %76 = vmatpush.bf16.msra.mxu0 0
    %77 = vmatpush.bf16.msra.mxu0 0
    %78 = vmatpush.bf16.msra.mxu0 %v69
    %79 = vmatmul.bf16.gmra.mxu0 %v65
    %v80 = vpop.f32.mrf.mxu0
    %v81 = vadd.f32 0.0, %v80
    %v82 = vpop.f32.mrf.mxu0
    %v83 = vadd.f32 0.0, %v82
    %84 = vdwg.mxu0
    %v87 = vunpack.c.l.b16 %v34
    %v88 = vunpack.c.l.b16 %v35
    %v89 = vpack.c.b16 %v88, %v87
    %vm91 = vcmask 130048
    %v93 = vsel %vm91, %v59, 0
    %95 = vmatpush.bf16.msra.mxu0 0
    %96 = vmatpush.bf16.msra.mxu0 0
    %97 = vmatpush.bf16.msra.mxu0 0
    %98 = vmatpush.bf16.msra.mxu0 0
    %99 = vmatpush.bf16.msra.mxu0 0
    %100 = vmatpush.bf16.msra.mxu0 0
    %101 = vmatpush.bf16.msra.mxu0 0
    %102 = vmatpush.bf16.msra.mxu0 %v89
    %103 = vmatmul.bf16.gmra.mxu0 %v93
    %v104 = vpop.f32.mrf.mxu0
    %v105 = vadd.f32 %v81, %v104
    %v106 = vpop.f32.mrf.mxu0
    %v107 = vadd.f32 %v83, %v106
    %108 = vdwg.mxu0
    %v109 = vperm.slane %v53, 0
    %v110 = vadd.f32 %v105, %v109
    %v111 = vadd.f32 %v107, %v109
    %v112 = vmax.f32 %v110, 0.0
    %v113 = vmax.f32 %v111, 0.0
    %v114 = vpack.c.bf16 %v113, %v112
    %v115 = vperm.slane %v54, 0
    %v132 = vunpack.c.l.b16 %v37
    %v133 = vunpack.c.l.b16 %v38
    %v134 = vunpack.c.l.b16 %v39
    %v135 = vunpack.c.l.b16 %v40
    %v136 = vunpack.c.l.b16 %v41
    %v137 = vunpack.c.l.b16 %v42
    %v138 = vunpack.c.l.b16 %v43
    %v139 = vunpack.c.l.b16 %v44
    %v140 = vunpack.c.l.b16 %v45
    %v141 = vunpack.c.l.b16 %v46
    %v142 = vunpack.c.l.b16 %v47
    %v143 = vunpack.c.l.b16 %v48
    %v144 = vunpack.c.l.b16 %v49
    %v145 = vunpack.c.l.b16 %v50
    %v146 = vunpack.c.l.b16 %v51
    %v147 = vunpack.c.l.b16 %v52
    %v148 = vpack.c.b16 %v133, %v132
    %v149 = vpack.c.b16 %v135, %v134
    %v150 = vpack.c.b16 %v137, %v136
    %v151 = vpack.c.b16 %v139, %v138
    %v152 = vpack.c.b16 %v141, %v140
    %v153 = vpack.c.b16 %v143, %v142
    %v154 = vpack.c.b16 %v145, %v144
    %v155 = vpack.c.b16 %v147, %v146
    %164 = vmatpush.bf16.msra.mxu0 %v155
    %165 = vmatpush.bf16.msra.mxu0 %v154
    %166 = vmatpush.bf16.msra.mxu0 %v153
    %167 = vmatpush.bf16.msra.mxu0 %v152
    %168 = vmatpush.bf16.msra.mxu0 %v151
    %169 = vmatpush.bf16.msra.mxu0 %v150
    %170 = vmatpush.bf16.msra.mxu0 %v149
    %171 = vmatpush.bf16.msra.mxu0 %v148
    %172 = vmatmul.bf16.gmra.mxu0 %v114
    %v173 = vpop.f32.mrf.mxu0
    %v174 = vadd.f32 %v115, %v173
    %v175 = vpop.f32.mrf.mxu0
    %v176 = vadd.f32 %v115, %v175
    %177 = vdwg.mxu0
    %v178 = vmax.f32 %v174, 0.0
    %v179 = vmax.f32 %v176, 0.0
    %v180 = vperm.slane %v55, 0
    %v181 = vmul.f32 %v178, %v180
    %v182 = vmul.f32 %v179, %v180
    %183 = vadd.xlane.f32.xlu0 %v181
    %v184 = vpop.xlane.xlu0 %183
    %185 = vadd.xlane.f32.xlu0 %v182
    %v186 = vpop.xlane.xlu0 %185
    %v187 = vperm.slane %v56, 0
    %v188 = vadd.f32 %v184, %v187
    %v189 = vadd.f32 %v186, %v187
    %vm190 = vcmask 7168
    %191 = vst.msk [vmem:[%s4] sm:$0xff] %vm190, %v188
    %192 = vst.msk [vmem:[%s4 + $0x8] sm:$0xff] %vm190, %v189
    // Predicated region
    $region22: #{critic_forward.1} parent=1 // pred_check
      _
    $region23: #{critic_forward.1} parent=1 // pred_check_branch
      %194 = sbr.rel (0) target = $region25
    $region24: #{critic_forward.1} parent=1 // pred_region
      _
    $region25: #{critic_forward.1} parent=1 // pred_fallthru
      _
    // Predicated region
    $region26: #{critic_forward.1} parent=1 // pred_check
      _
    $region27: #{critic_forward.1} parent=1 // pred_check_branch
      %196 = sbr.rel (0) target = $region29
    $region28: #{critic_forward.1} parent=1 // pred_region
      _
    $region29: #{critic_forward.1} parent=1 // pred_fallthru
      _
    %197 = vsyncpa [#allocation3], 1

</llo_original>
